<compile_context>
chip_gen: v6e
topology: v6e:2x2x1
jax: 0.10.0
libtpu: 0.0.40
codegen_flags: <defaults>
</compile_context>

<pallas_src>
import jax
import jax.numpy as jnp
from jax.experimental import pallas as pl
from jax.experimental.pallas import tpu as pltpu


_LANE = 128        # lane width (last dim)
_SUBLANE_32B = 8   # sublane width for 32-bit dtypes (second-to-last dim)


def _round_up(n: int, m: int) -> int:
    return ((n + m - 1) // m) * m


def _chomp_copy_kernel(x_ref, o_ref):
    # Input and output blocks are identical (TR, TL) windows at the same
    # element offsets (the chomp offset is 0), so this is a straight full-tile
    # copy. Ragged edges: Pallas pads the read side and masks the store side.
    o_ref[...] = x_ref[...]


def _block_budget_bytes() -> int:
    """Generation-aware per-block byte budget (4x this is the VMEM peak)."""
    try:
        info = pltpu.get_tpu_info()
        vmem_cap = int(getattr(info, "vmem_capacity_bytes", 64 * 1024 * 1024))
    except Exception:
        vmem_cap = 64 * 1024 * 1024  # conservative (v7x-safe) fallback
    if vmem_cap >= 128 * 1024 * 1024:
        return 12 * 1024 * 1024      # v5e / v6e: 128 MiB physical VMEM
    return 8 * 1024 * 1024           # v7x: 64 MiB physical VMEM per TC


def chomp1d(x: jax.Array, chomp_size: int) -> jax.Array:
    """Equivalent of torch Chomp1d(chomp_size).forward(x) for x of shape (B, C, L).

    Note: torch's x[:, :, :-0] degenerately returns an empty tensor; this
    implementation requires 0 < chomp_size < L (at least one kept element).
    """
    assert x.ndim == 3, "expected (B, C, L)"
    B, C, L = x.shape
    assert 0 < chomp_size < L, "chomp_size must be in (0, L)"
    L_out = L - chomp_size

    # Fold batch and channels into one row axis; the chomp is independent per
    # row and (B, C, L) -> (B*C, L) is a free (contiguous) reshape.
    R = B * C
    x2 = x.reshape(R, L)
    itemsize = x.dtype.itemsize

    # dtype-aware sublane multiple: 8 for f32, 16 for bf16, 32 for int8/fp8.
    sublane = max(_SUBLANE_32B, (_SUBLANE_32B * 4) // itemsize)

    target_block_bytes = _block_budget_bytes()

    # Maximize the column tile first (whole-row tile when it fits the budget):
    # contiguous output writeback, fewer grid steps, one ragged tile per row
    # group instead of one per (row, column) step.
    TL_full = _round_up(L_out, _LANE)
    if TL_full * sublane * itemsize <= target_block_bytes:
        TL = TL_full
        rows_budget = max(sublane, target_block_bytes // (TL * itemsize))
        rows_budget = (rows_budget // sublane) * sublane
        TR = min(_round_up(R, sublane), rows_budget)
    else:
        # A full row per sublane group exceeds the budget: minimal row group,
        # largest lane-aligned column tile that fits.
        TR = sublane
        TL = max(_LANE, (target_block_bytes // (TR * itemsize)) // _LANE * _LANE)
        TL = min(TL, TL_full)

    grid_r = pl.cdiv(R, TR)
    grid_l = pl.cdiv(L_out, TL)

    # Keep >= 2 blocks on a parallel axis when possible so both v7x
    # TensorCores get work (harmless on single-TC v5e/v6e).
    if grid_r == 1 and grid_l == 1:
        if R > sublane:
            TR = _round_up(pl.cdiv(R, 2), sublane)
            grid_r = pl.cdiv(R, TR)
        elif L_out > _LANE:
            TL = _round_up(pl.cdiv(L_out, 2), _LANE)
            grid_l = pl.cdiv(L_out, TL)

    # Double-buffered (in + out) blocks plus headroom for compiler scratch.
    block_bytes = TR * TL * itemsize
    vmem_limit = max(4 * block_bytes + 2 * 1024 * 1024, 8 * 1024 * 1024)

    out2 = pl.pallas_call(
        _chomp_copy_kernel,
        out_shape=jax.ShapeDtypeStruct((R, L_out), x.dtype),
        grid_spec=pltpu.PrefetchScalarGridSpec(
            num_scalar_prefetch=0,
            grid=(grid_r, grid_l),
            # Input blocks cover only the kept prefix [0, L_out) plus at most
            # one padded ragged column tile per row group.
            in_specs=[pl.BlockSpec((TR, TL), lambda r, l: (r, l))],
            out_specs=pl.BlockSpec((TR, TL), lambda r, l: (r, l)),
        ),
        compiler_params=pltpu.CompilerParams(
            dimension_semantics=("parallel", "parallel"),
            vmem_limit_bytes=int(vmem_limit),
        ),
    )(x2)

    return out2.reshape(B, C, L_out)


if __name__ == "__main__":
    # Chomp1d has no parameters; just deterministic inputs.
    key = jax.random.PRNGKey(0)

    # Primary check: module-consistent small shape.
    B, C, L = 2, 4, 16
    chomp_size = 3
    x = jax.random.normal(key, (B, C, L), dtype=jnp.float32)
    out = jax.block_until_ready(chomp1d(x, chomp_size))
    ref = x[:, :, :-chomp_size]
    assert out.shape == (B, C, L - chomp_size), out.shape
    assert jnp.array_equal(out, ref), "mismatch vs reference slice (f32)"

    # Extra small checks: multi-block grid (exercises the two-block row split)
    # and a packed dtype (exercises dtype-aware sublane rounding).
    k2, k3 = jax.random.split(key)
    x2 = jax.random.normal(k2, (2, 16, 300), dtype=jnp.float32)
    out2 = jax.block_until_ready(chomp1d(x2, 5))
    assert jnp.array_equal(out2, x2[:, :, :-5]), "mismatch vs reference slice (multi-block)"

    x3 = jax.random.normal(k3, (2, 4, 40), dtype=jnp.bfloat16)
    out3 = jax.block_until_ready(chomp1d(x3, 7))
    assert jnp.array_equal(out3, x3[:, :, :-7]), "mismatch vs reference slice (bf16)"

    print("KERNEL_OK")
</pallas_src>

<mosaic_0001>
module attributes {stable_mosaic.version = 11 : i64} {
  func.func @_chomp_copy_kernel(%arg0: i32, %arg1: i32, %arg2: memref<8x128xf32, #tpu.memory_space<vmem>>, %arg3: memref<8x128xf32, #tpu.memory_space<vmem>>) attributes {dimension_semantics = [#tpu.dimension_semantics<parallel>, #tpu.dimension_semantics<parallel>], iteration_bounds = array<i64: 1, 1>, scalar_prefetch = 0 : i64, scratch_operands = 0 : i64, tpu.core_type = #tpu.core_type<tc>, window_params = [{transform_indices = @transform_0, window_bounds = array<i64: 8, 128>}, {transform_indices = @transform_1, window_bounds = array<i64: 8, 128>}]} {
    %c0 = arith.constant 0 : index
    %c0_0 = arith.constant 0 : index
    %0 = vector.load %arg2[%c0, %c0_0] : memref<8x128xf32, #tpu.memory_space<vmem>>, vector<8x128xf32>
    %c0_1 = arith.constant 0 : index
    %c0_2 = arith.constant 0 : index
    %1 = vector.load %arg3[%c0_1, %c0_2] : memref<8x128xf32, #tpu.memory_space<vmem>>, vector<8x128xf32>
    tpu.vector_store %arg3[%c0_1, %c0_2], %0 {strides = array<i32>} : memref<8x128xf32, #tpu.memory_space<vmem>>, vector<8x128xf32>,
    return
  }
  func.func @transform_0(%arg0: i32, %arg1: i32) -> (i32, i32) {
    %c0_i32 = arith.constant 0 : i32
    return %arg0, %arg1 : i32, i32
  }
  func.func @transform_1(%arg0: i32, %arg1: i32) -> (i32, i32) {
    %c0_i32 = arith.constant 0 : i32
    return %arg0, %arg1 : i32, i32
  }
}

</mosaic_0001>

<llo_original>
// kernel: tpu_custom_call.1
$region0: #{tpu_custom_call.1}
  #allocation0 [shape = 'u32[]', space=smem, size = 0x4, offset = 0x4, fixed_abs, tag = 'smem constant byte address 0x4 - core index']
  #allocation1 [shape = 'u32[144,128]{1,0:T(1,128)}', space=vmem, size = 0x12000, scoped, tag = 'internal scratch']
  %s0 = inlined_call_operand.hbm [shape: f32[8,16], index: 0, kind: input, shape index: {}]
  %s1 = inlined_call_operand.hbm [shape: f32[8,13], index: 1, kind: output, shape index: {}]
  %s2 = sld [smem:[#allocation0]]
  $region18: #{tpu_custom_call.1} parent=0
    _
  %s4 = ssub.s32 1, %s2
  %s5 = scalar_select 0, %s4, %s2
  $region1: #{tpu_custom_call.1} parent=0
    #allocation2 [shape = 'u8[4096]{0}', space=vmem, size = 0x1000, scoped, tag = 'input window, operand 0, single buffered']
    #allocation3 [shape = 's32[1]{0}', space=sflag, size = 0x4, scoped, tag = 'scoped memory for tpu_custom_call.1']
    #allocation4 [shape = 's32[1]{0}', space=sflag, size = 0x4, scoped, tag = 'scoped memory for tpu_custom_call.1']
    #allocation5 [shape = 'u8[4096]{0}', space=vmem, size = 0x1000, scoped, tag = 'output window, operand 0, single buffered']
    %6 = vsyncpa [#allocation3], 0
    %7 = vsyncpa [#allocation4], 0
    // Predicated region
    $region2: #{tpu_custom_call.1} parent=1 // pred_check
      _
    $region3: #{tpu_custom_call.1} parent=1 // pred_check_branch
      %9 = sbr.rel (0) target = $region5
    $region4: #{tpu_custom_call.1} parent=1 // pred_region
      %s11 = ssub.s32 128, 128
      %12 = vsyncadd [#allocation3], %s11
      %s14 = sshll.u32 [#allocation2], 4
      %s15 = int_to_ptr.vmem [resolvable:$true] %s14
      %17 = dma.hbm_to_vmem [thread:$0]  %s0, 128, %s15, [#allocation3]
    $region5: #{tpu_custom_call.1} parent=1 // pred_fallthru
      _
    // Predicated region
    $region6: #{tpu_custom_call.1} parent=1 // pred_check
      _
    $region7: #{tpu_custom_call.1} parent=1 // pred_check_branch
      %19 = sbr.rel (0) target = $region9
    $region8: #{tpu_custom_call.1} parent=1 // pred_region
      %20 = dma.done [#allocation3], 128
    $region9: #{tpu_custom_call.1} parent=1 // pred_fallthru
      _
    %v21 = vld [vmem:[#allocation2] sm:$0xff]
    %22 = vst [vmem:[#allocation5] sm:$0xff] %v21
    // Predicated region
    $region10: #{tpu_custom_call.1} parent=1 // pred_check
      _
    $region11: #{tpu_custom_call.1} parent=1 // pred_check_branch
      %24 = sbr.rel (0) target = $region13
    $region12: #{tpu_custom_call.1} parent=1 // pred_region
      %s26 = ssub.s32 128, 128
      %27 = vsyncadd [#allocation4], %s26
      %s29 = sshll.u32 [#allocation5], 4
      %s30 = int_to_ptr.vmem [resolvable:$true] %s29
      %32 = dma.vmem_to_hbm [thread:$0]  %s30, 128, %s1, [#allocation4]
    $region13: #{tpu_custom_call.1} parent=1 // pred_fallthru
      _
    // Predicated region
    $region14: #{tpu_custom_call.1} parent=1 // pred_check
      _
    $region15: #{tpu_custom_call.1} parent=1 // pred_check_branch
      %34 = sbr.rel (0) target = $region17
    $region16: #{tpu_custom_call.1} parent=1 // pred_region
      %35 = dma.done [#allocation4], 128
    $region17: #{tpu_custom_call.1} parent=1 // pred_fallthru
      _
    %36 = vsyncpa [#allocation3], 1
    %37 = vsyncpa [#allocation4], 1

</llo_original>
